<compile_context>
chip_gen: v6e
topology: v6e:2x2x1
jax: 0.10.0
libtpu: 0.0.40
codegen_flags: <defaults>
</compile_context>

<pallas_src>
import functools

import jax
import jax.numpy as jnp
from jax.experimental import pallas as pl
from jax.experimental.pallas import tpu as pltpu


def _adaln_kernel(scale_ref, shift_ref, h_ref, o_ref, *, eps):
    """One (batch-tile, row-tile) grid step.

    scale_ref / shift_ref: (bb, 1, D) f32     h_ref / o_ref: (bb, tt, D)
    """
    h = h_ref[...].astype(jnp.float32)                       # (bb, tt, D)
    # Single-pass statistics (D is the full, un-tiled lane axis -> exact row reductions).
    mean = jnp.mean(h, axis=-1, keepdims=True)               # (bb, tt, 1)
    meansq = jnp.mean(h * h, axis=-1, keepdims=True)
    var = jnp.maximum(meansq - mean * mean, 0.0)              # guard tiny cancellation
    inv = jax.lax.rsqrt(var + eps)                            # EUP
    c = h - mean
    g = inv * (1.0 + scale_ref[...])                          # (bb,tt,1)*(bb,1,D)
    o_ref[...] = (c * g + shift_ref[...]).astype(o_ref.dtype)


def _choose_tiles(B, T, D, itemsize, target_bytes):
    """Pick (bb, tt) so each grid step streams ~target_bytes of h and blocks stay legal."""
    rows = max(8, target_bytes // max(1, D * itemsize))       # row budget per step
    if rows >= T or T <= 8:
        tt = T                                                # full T dim: always legal
        bb = min(B, max(1, rows // max(T, 1)))
    else:
        tt = min(T, (rows // 8) * 8)                          # multiple of 8 (<= T)
        bb = 1
    return bb, tt


@functools.partial(jax.jit, static_argnames=("eps", "target_block_bytes"))
def adaln(h, emb, weight, bias, *, eps=1e-6, target_block_bytes=2 << 20):
    """AdaLN forward.

    h:      (B, T, D)   latent sequence
    emb:    (B, E)      conditioning embedding
    weight: (2*D, E)    nn.Linear(E, 2*D) weight (PyTorch layout)
    bias:   (2*D,)      nn.Linear bias
    """
    B, T, D = h.shape
    Bm, E = emb.shape
    assert Bm == B
    assert weight.shape == (2 * D, E)
    assert bias.shape == (2 * D,)

    # --- Hoisted conditioning path (tiny; plain XLA matmul, f32 accumulate) ------------
    emb_out = (jax.nn.silu(emb.astype(jnp.float32))
               @ weight.T.astype(jnp.float32)
               + bias.astype(jnp.float32))                    # (B, 2D)
    scale = emb_out[:, :D].reshape(B, 1, D)                   # (B, 1, D) f32
    shift = emb_out[:, D:].reshape(B, 1, D)

    # --- Streaming kernel over h --------------------------------------------------------
    bb, tt = _choose_tiles(B, T, D, jnp.dtype(h.dtype).itemsize, target_block_bytes)
    grid = (pl.cdiv(B, bb), pl.cdiv(T, tt))

    kernel = functools.partial(_adaln_kernel, eps=eps)

    return pl.pallas_call(
        kernel,
        out_shape=jax.ShapeDtypeStruct((B, T, D), h.dtype),
        grid_spec=pltpu.PrefetchScalarGridSpec(
            num_scalar_prefetch=0,
            grid=grid,
            in_specs=[
                pl.BlockSpec((bb, 1, D), lambda bi, ti: (bi, 0, 0)),    # scale
                pl.BlockSpec((bb, 1, D), lambda bi, ti: (bi, 0, 0)),    # shift
                pl.BlockSpec((bb, tt, D), lambda bi, ti: (bi, ti, 0)),  # h tile
            ],
            out_specs=pl.BlockSpec((bb, tt, D), lambda bi, ti: (bi, ti, 0)),
        ),
        compiler_params=pltpu.CompilerParams(
            # Both axes are fully independent after hoisting scale/shift -> megacore can
            # split either axis (helps v7x even when B == 1).  Default VMEM limit is ample
            # for ~2 MiB blocks on all generations, so no explicit vmem_limit_bytes.
            dimension_semantics=("parallel", "parallel"),
        ),
    )(scale, shift, h)


def init_adaln_params(key, latent_dim, embed_dim=None, zero_init=True, dtype=jnp.float32):
    """Params of AdaLN.emb_layers[1] = nn.Linear(embed_dim, 2*latent_dim, bias=True)."""
    if embed_dim is None:
        embed_dim = latent_dim
    out_dim = 2 * latent_dim
    if zero_init:  # matches zero_module() in the PyTorch spec
        return jnp.zeros((out_dim, embed_dim), dtype), jnp.zeros((out_dim,), dtype)
    kw, kb = jax.random.split(key)
    bound = 1.0 / (embed_dim ** 0.5)
    weight = jax.random.uniform(kw, (out_dim, embed_dim), dtype, -bound, bound)
    bias = jax.random.uniform(kb, (out_dim,), dtype, -bound, bound)
    return weight, bias


def adaln_ref(h, emb, weight, bias, eps=1e-6):
    """Pure-JAX reference (same math as the PyTorch module)."""
    emb_out = jax.nn.silu(emb) @ weight.T + bias
    scale, shift = jnp.split(emb_out, 2, axis=-1)
    mean = jnp.mean(h, axis=-1, keepdims=True)
    c = h - mean
    var = jnp.mean(c * c, axis=-1, keepdims=True)
    hn = c * jax.lax.rsqrt(var + eps)
    return hn * (1 + scale[:, None, :]) + shift[:, None, :]


if __name__ == "__main__":
    key = jax.random.PRNGKey(0)
    kh, ke, kp, kh2, ke2 = jax.random.split(key, 5)

    # Small, lane-aligned shapes (D multiple of 128 -> dense unmasked stores).
    batch, seq, latent_dim, embed_dim = 2, 16, 128, 128
    h = jax.random.normal(kh, (batch, seq, latent_dim), jnp.float32)
    emb = jax.random.normal(ke, (batch, embed_dim), jnp.float32)

    # Non-zero params exercise the (hoisted) SiLU + Linear conditioning path.
    weight, bias = init_adaln_params(kp, latent_dim, embed_dim, zero_init=False)
    y = jax.block_until_ready(adaln(h, emb, weight, bias))
    y_ref = adaln_ref(h, emb, weight, bias)
    assert y.shape == (batch, seq, latent_dim)
    assert jnp.allclose(y, y_ref, atol=1e-4, rtol=1e-4), float(jnp.max(jnp.abs(y - y_ref)))

    # zero_module() init (the actual module spec): output must equal plain LayerNorm(h).
    w0, b0 = init_adaln_params(kp, latent_dim, embed_dim, zero_init=True)
    y0 = jax.block_until_ready(adaln(h, emb, w0, b0))
    assert jnp.allclose(y0, adaln_ref(h, emb, w0, b0), atol=1e-5, rtol=1e-5)

    # Multi-tile + ragged-last-T-tile path (tiny block budget forces grid=(3, 6), last tile
    # covering only 4 of 8 rows) -> verifies masked partial writes / padding handling.
    h2 = jax.random.normal(kh2, (3, 44, latent_dim), jnp.float32)
    emb2 = jax.random.normal(ke2, (3, embed_dim), jnp.float32)
    y2 = jax.block_until_ready(adaln(h2, emb2, weight, bias, target_block_bytes=4096))
    assert jnp.allclose(y2, adaln_ref(h2, emb2, weight, bias), atol=1e-4, rtol=1e-4)

    print("KERNEL_OK")
</pallas_src>

<mosaic_0001>
module attributes {stable_mosaic.version = 11 : i64} {
  func.func @_adaln_kernel(%arg0: i32, %arg1: i32, %arg2: memref<2x1x128xf32, #tpu.memory_space<vmem>>, %arg3: memref<2x1x128xf32, #tpu.memory_space<vmem>>, %arg4: memref<2x16x128xf32, #tpu.memory_space<vmem>>, %arg5: memref<2x16x128xf32, #tpu.memory_space<vmem>>) attributes {dimension_semantics = [#tpu.dimension_semantics<parallel>, #tpu.dimension_semantics<parallel>], iteration_bounds = array<i64: 1, 1>, scalar_prefetch = 0 : i64, scratch_operands = 0 : i64, tpu.core_type = #tpu.core_type<tc>, window_params = [{transform_indices = @transform_0, window_bounds = array<i64: 2, 1, 128>}, {transform_indices = @transform_1, window_bounds = array<i64: 2, 1, 128>}, {transform_indices = @transform_2, window_bounds = array<i64: 2, 16, 128>}, {transform_indices = @transform_3, window_bounds = array<i64: 2, 16, 128>}]} {
    %c0 = arith.constant 0 : index
    %c0_0 = arith.constant 0 : index
    %c0_1 = arith.constant 0 : index
    %0 = vector.load %arg4[%c0, %c0_0, %c0_1] : memref<2x16x128xf32, #tpu.memory_space<vmem>>, vector<2x16x128xf32>
    %cst = arith.constant dense<0.000000e+00> : vector<2x16xf32>
    %1 = vector.multi_reduction <add>, %0, %cst [2] : vector<2x16x128xf32> to vector<2x16xf32>
    %2 = vector.shape_cast %1 : vector<2x16xf32> to vector<2x16x1xf32>
    %cst_2 = arith.constant 1.280000e+02 : f32
    %3 = vector.broadcast %cst_2 : f32 to vector<2x16x1xf32>
    %4 = arith.divf %2, %3 : vector<2x16x1xf32>
    %5 = arith.mulf %0, %0 : vector<2x16x128xf32>
    %cst_3 = arith.constant dense<0.000000e+00> : vector<2x16xf32>
    %6 = vector.multi_reduction <add>, %5, %cst_3 [2] : vector<2x16x128xf32> to vector<2x16xf32>
    %7 = vector.shape_cast %6 : vector<2x16xf32> to vector<2x16x1xf32>
    %cst_4 = arith.constant 1.280000e+02 : f32
    %8 = vector.broadcast %cst_4 : f32 to vector<2x16x1xf32>
    %9 = arith.divf %7, %8 : vector<2x16x1xf32>
    %10 = arith.mulf %4, %4 : vector<2x16x1xf32>
    %11 = arith.subf %9, %10 : vector<2x16x1xf32>
    %cst_5 = arith.constant 0.000000e+00 : f32
    %12 = vector.broadcast %cst_5 : f32 to vector<2x16x1xf32>
    %13 = arith.maximumf %11, %12 : vector<2x16x1xf32>
    %cst_6 = arith.constant 9.99999997E-7 : f32
    %14 = vector.broadcast %cst_6 : f32 to vector<2x16x1xf32>
    %15 = arith.addf %13, %14 : vector<2x16x1xf32>
    %16 = math.rsqrt %15 : vector<2x16x1xf32>
    %17 = vector.broadcast %4 : vector<2x16x1xf32> to vector<2x16x128xf32>
    %18 = arith.subf %0, %17 : vector<2x16x128xf32>
    %c0_7 = arith.constant 0 : index
    %c0_8 = arith.constant 0 : index
    %c0_9 = arith.constant 0 : index
    %19 = vector.load %arg2[%c0_7, %c0_8, %c0_9] : memref<2x1x128xf32, #tpu.memory_space<vmem>>, vector<2x1x128xf32>
    %cst_10 = arith.constant 1.000000e+00 : f32
    %20 = vector.broadcast %cst_10 : f32 to vector<2x1x128xf32>
    %21 = arith.addf %20, %19 : vector<2x1x128xf32>
    %22 = vector.broadcast %16 : vector<2x16x1xf32> to vector<2x16x128xf32>
    %23 = vector.broadcast %21 : vector<2x1x128xf32> to vector<2x16x128xf32>
    %24 = arith.mulf %22, %23 : vector<2x16x128xf32>
    %25 = arith.mulf %18, %24 : vector<2x16x128xf32>
    %c0_11 = arith.constant 0 : index
    %c0_12 = arith.constant 0 : index
    %c0_13 = arith.constant 0 : index
    %26 = vector.load %arg3[%c0_11, %c0_12, %c0_13] : memref<2x1x128xf32, #tpu.memory_space<vmem>>, vector<2x1x128xf32>
    %27 = vector.broadcast %26 : vector<2x1x128xf32> to vector<2x16x128xf32>
    %28 = arith.addf %25, %27 : vector<2x16x128xf32>
    %c0_14 = arith.constant 0 : index
    %c0_15 = arith.constant 0 : index
    %c0_16 = arith.constant 0 : index
    %29 = vector.load %arg5[%c0_14, %c0_15, %c0_16] : memref<2x16x128xf32, #tpu.memory_space<vmem>>, vector<2x16x128xf32>
    tpu.vector_store %arg5[%c0_14, %c0_15, %c0_16], %28 {strides = array<i32>} : memref<2x16x128xf32, #tpu.memory_space<vmem>>, vector<2x16x128xf32>,
    return
  }
  func.func @transform_0(%arg0: i32, %arg1: i32) -> (i32, i32, i32) {
    %c0_i32 = arith.constant 0 : i32
    %c0_i32_0 = arith.constant 0 : i32
    %c0_i32_1 = arith.constant 0 : i32
    return %arg0, %c0_i32, %c0_i32_0 : i32, i32, i32
  }
  func.func @transform_1(%arg0: i32, %arg1: i32) -> (i32, i32, i32) {
    %c0_i32 = arith.constant 0 : i32
    %c0_i32_0 = arith.constant 0 : i32
    %c0_i32_1 = arith.constant 0 : i32
    return %arg0, %c0_i32, %c0_i32_0 : i32, i32, i32
  }
  func.func @transform_2(%arg0: i32, %arg1: i32) -> (i32, i32, i32) {
    %c0_i32 = arith.constant 0 : i32
    %c0_i32_0 = arith.constant 0 : i32
    return %arg0, %arg1, %c0_i32 : i32, i32, i32
  }
  func.func @transform_3(%arg0: i32, %arg1: i32) -> (i32, i32, i32) {
    %c0_i32 = arith.constant 0 : i32
    %c0_i32_0 = arith.constant 0 : i32
    return %arg0, %arg1, %c0_i32 : i32, i32, i32
  }
}

</mosaic_0001>

<llo_original>
// kernel: adaln.1
$region0: #{adaln.1}
  #allocation0 [shape = 'u32[]', space=smem, size = 0x4, offset = 0x4, fixed_abs, tag = 'smem constant byte address 0x4 - core index']
  #allocation1 [shape = 'u32[144,128]{1,0:T(1,128)}', space=vmem, size = 0x12000, scoped, tag = 'internal scratch']
  %s0 = inlined_call_operand.vmem [shape: f32[2,1,128], index: 0, kind: input, shape index: {}]
  %s1 = inlined_call_operand.vmem [shape: f32[2,1,128], index: 1, kind: input, shape index: {}]
  %s2 = inlined_call_operand.vmem [shape: f32[2,16,128], index: 2, kind: input, shape index: {}]
  %s3 = inlined_call_operand.hbm [shape: f32[2,16,128], index: 3, kind: output, shape index: {}]
  %s4 = sld [smem:[#allocation0]]
  $region22: #{adaln.1} parent=0
    _
  %s6 = ssub.s32 1, %s4
  %s7 = scalar_select 0, %s6, %s4
  $region1: #{adaln.1} parent=0
    #allocation2 [shape = 'u8[16384]{0}', space=vmem, size = 0x4000, scoped, tag = 'output window, operand 0, single buffered']
    #allocation3 [shape = 's32[1]{0}', space=sflag, size = 0x4, scoped, tag = 'scoped memory for adaln.1']
    %8 = vsyncpa [#allocation3], 0
    // Predicated region
    $region2: #{adaln.1} parent=1 // pred_check
      _
    $region3: #{adaln.1} parent=1 // pred_check_branch
      %10 = sbr.rel (0) target = $region5
    $region4: #{adaln.1} parent=1 // pred_region
      _
    $region5: #{adaln.1} parent=1 // pred_fallthru
      _
    // Predicated region
    $region6: #{adaln.1} parent=1 // pred_check
      _
    $region7: #{adaln.1} parent=1 // pred_check_branch
      %12 = sbr.rel (0) target = $region9
    $region8: #{adaln.1} parent=1 // pred_region
      _
    $region9: #{adaln.1} parent=1 // pred_fallthru
      _
    // Predicated region
    $region10: #{adaln.1} parent=1 // pred_check
      _
    $region11: #{adaln.1} parent=1 // pred_check_branch
      %14 = sbr.rel (0) target = $region13
    $region12: #{adaln.1} parent=1 // pred_region
      _
    $region13: #{adaln.1} parent=1 // pred_fallthru
      _
    %v15 = vld [vmem:[%s2] sm:$0xff]
    %v16 = vld [vmem:[%s2 + $0x8] sm:$0xff]
    %v17 = vld [vmem:[%s2 + $0x10] sm:$0xff]
    %v18 = vld [vmem:[%s2 + $0x18] sm:$0xff]
    %19 = vadd.xlane.f32.xlu0 %v15
    %v20 = vpop.xlane.xlu0 %19
    %21 = vadd.xlane.f32.xlu0 %v16
    %v22 = vpop.xlane.xlu0 %21
    %23 = vadd.xlane.f32.xlu0 %v17
    %v24 = vpop.xlane.xlu0 %23
    %25 = vadd.xlane.f32.xlu0 %v18
    %v26 = vpop.xlane.xlu0 %25
    %v27 = vrcp.pop 128.0
    %v28 = vmul.f32 %v20, %v27
    %v29 = vmul.f32 %v22, %v27
    %v30 = vmul.f32 %v24, %v27
    %v31 = vmul.f32 %v26, %v27
    %v32 = vmul.f32 %v15, %v15
    %v33 = vmul.f32 %v16, %v16
    %v34 = vmul.f32 %v17, %v17
    %v35 = vmul.f32 %v18, %v18
    %36 = vadd.xlane.f32.xlu0 %v32
    %v37 = vpop.xlane.xlu0 %36
    %38 = vadd.xlane.f32.xlu0 %v33
    %v39 = vpop.xlane.xlu0 %38
    %40 = vadd.xlane.f32.xlu0 %v34
    %v41 = vpop.xlane.xlu0 %40
    %42 = vadd.xlane.f32.xlu0 %v35
    %v43 = vpop.xlane.xlu0 %42
    %v44 = vmul.f32 %v37, %v27
    %v45 = vmul.f32 %v39, %v27
    %v46 = vmul.f32 %v41, %v27
    %v47 = vmul.f32 %v43, %v27
    %v48 = vmul.f32 %v28, %v28
    %v49 = vmul.f32 %v29, %v29
    %v50 = vmul.f32 %v30, %v30
    %v51 = vmul.f32 %v31, %v31
    %v52 = vsub.f32 %v44, %v48
    %v53 = vsub.f32 %v45, %v49
    %v54 = vsub.f32 %v46, %v50
    %v55 = vsub.f32 %v47, %v51
    %v56 = vmax.f32 %v52, 0.0
    %v57 = vmax.f32 %v53, 0.0
    %v58 = vmax.f32 %v54, 0.0
    %v59 = vmax.f32 %v55, 0.0
    %v60 = vadd.f32 %v56, 1e-06
    %v61 = vadd.f32 %v57, 1e-06
    %v62 = vadd.f32 %v58, 1e-06
    %v63 = vadd.f32 %v59, 1e-06
    %v64 = vrsqrt.pop %v60
    %v65 = vrsqrt.pop %v61
    %v66 = vrsqrt.pop %v62
    %v67 = vrsqrt.pop %v63
    %v68 = vsub.f32 %v15, %v28
    %v69 = vsub.f32 %v16, %v29
    %v70 = vsub.f32 %v17, %v30
    %v71 = vsub.f32 %v18, %v31
    %v72 = vld [vmem:[%s0] sm:$0x1]
    %v73 = vld [vmem:[%s0 + $0x1] sm:$0x1]
    %v74 = vadd.f32 %v72, 1.0
    %v75 = vadd.f32 %v73, 1.0
    %v78 = vlaneseq
    %v79 = vshrl.u32 %v78, 7
    %v80 = vsub.s32 0, %v79
    %v81 = vrot.slane %v74, %v80
    %v82 = vlaneseq
    %v83 = vshrl.u32 %v82, 7
    %v84 = vsub.s32 0, %v83
    %v85 = vrot.slane %v75, %v84
    %v88 = vmul.f32 %v64, %v81
    %v89 = vmul.f32 %v65, %v81
    %v90 = vmul.f32 %v66, %v85
    %v91 = vmul.f32 %v67, %v85
    %v92 = vmul.f32 %v68, %v88
    %v93 = vmul.f32 %v69, %v89
    %v94 = vmul.f32 %v70, %v90
    %v95 = vmul.f32 %v71, %v91
    %v96 = vld [vmem:[%s1] sm:$0x1]
    %v97 = vld [vmem:[%s1 + $0x1] sm:$0x1]
    %v100 = vlaneseq
    %v101 = vshrl.u32 %v100, 7
    %v102 = vsub.s32 0, %v101
    %v103 = vrot.slane %v96, %v102
    %v104 = vlaneseq
    %v105 = vshrl.u32 %v104, 7
    %v106 = vsub.s32 0, %v105
    %v107 = vrot.slane %v97, %v106
    %v110 = vadd.f32 %v92, %v103
    %v111 = vadd.f32 %v93, %v103
    %v112 = vadd.f32 %v94, %v107
    %v113 = vadd.f32 %v95, %v107
    %114 = vst [vmem:[#allocation2] sm:$0xff] %v110
    %115 = vst [vmem:[#allocation2 + $0x8] sm:$0xff] %v111
    %116 = vst [vmem:[#allocation2 + $0x10] sm:$0xff] %v112
    %117 = vst [vmem:[#allocation2 + $0x18] sm:$0xff] %v113
    // Predicated region
    $region14: #{adaln.1} parent=1 // pred_check
      _
    $region15: #{adaln.1} parent=1 // pred_check_branch
      %119 = sbr.rel (0) target = $region17
    $region16: #{adaln.1} parent=1 // pred_region
      %s121 = ssub.s32 512, 512
      %122 = vsyncadd [#allocation3], %s121
      %s123 = sshll.u32 [#allocation2], 4
      %s124 = int_to_ptr.vmem [resolvable:$true] %s123
      %129 = dma.vmem_to_hbm [thread:$0]  %s124, 512, %s3, [#allocation3], 128, 128, 8
    $region17: #{adaln.1} parent=1 // pred_fallthru
      _
    // Predicated region
    $region18: #{adaln.1} parent=1 // pred_check
      _
    $region19: #{adaln.1} parent=1 // pred_check_branch
      %131 = sbr.rel (0) target = $region21
    $region20: #{adaln.1} parent=1 // pred_region
      %132 = dma.done [#allocation3], 512
    $region21: #{adaln.1} parent=1 // pred_fallthru
      _
    %133 = vsyncpa [#allocation3], 1

</llo_original>
